<compile_context>
chip_gen: v7x
topology: tpu7x:2x2x1
jax: 0.10.0
libtpu: 0.0.40
codegen_flags: <defaults>
</compile_context>

<pallas_src>
import jax
import jax.numpy as jnp
from jax import lax
from jax.experimental import pallas as pl
from jax.experimental.pallas import tpu as pltpu

N_EMBED = 32
NUM_EXPERTS = 4
TOP_K = 2                      # kernel is specialized to top_k == 2
FOLD = 8                       # tokens folded per row -> dense (8, R) vregs
DF = FOLD * N_EMBED            # 256: folded feature width (2 lane tiles)
EF = NUM_EXPERTS * FOLD        # 32: rows of folded logits / probs
KF = TOP_K * FOLD              # 16: rows of folded indices

TILE_MIN = 1024                # smallest tile so R = tile/FOLD = 128 lanes
TILE_MAX = 16 * 1024           # ~0.3 KiB/token -> ~5 MiB double-buffered VMEM


def router_kernel(x_ref, w_ref, b_ref, probs_ref, idx_ref):
    """One grid step over `tile` tokens, folded 8 per row.

    x_ref    : (R, DF)  row r holds tokens 8r..8r+7 (32 features each)
    w_ref    : (EF, DF) block-diagonal 8x-replicated router weight
    b_ref    : (EF, 1)  replicated bias
    probs_ref: (EF, R)  row 8e+g, col r = prob(token 8r+g, expert e)
    idx_ref  : (KF, R)  row 8k+g, col r = k-th expert id of token 8r+g
    """
    x = x_ref[...]
    w = w_ref[...]

    # MXU in the q.kT form (contract last dims of both operands): no transpose
    # of the big x tile is materialized (same pattern as flash-attn q.kT).
    logits = lax.dot_general(
        w, x, (((1,), (1,)), ((), ())),
        preferred_element_type=jnp.float32) + b_ref[...]            # (EF, R)

    # Expert e's logits for all tokens of the tile: a dense (FOLD, R) slice.
    l = [logits[e * FOLD:(e + 1) * FOLD, :] for e in range(NUM_EXPERTS)]
    idx_const = [jnp.full(l[0].shape, e, jnp.int32) for e in range(NUM_EXPERTS)]

    def pairmax(va, ia, vb, ib):
        take_b = vb > va          # strict '>' : ties keep the lower expert id
        return jnp.where(take_b, vb, va), jnp.where(take_b, ib, ia)

    # Top-1 via a pairwise tournament (pure VPU on dense (8, R) operands).
    m01, i01 = pairmax(l[0], idx_const[0], l[1], idx_const[1])
    m23, i23 = pairmax(l[2], idx_const[2], l[3], idx_const[3])
    m1, idx1 = pairmax(m01, i01, m23, i23)

    # Top-2: mask the winner with -inf and rerun the tournament.  Indices are
    # always in [0, NUM_EXPERTS), even for NaN logits.
    neg_inf = jnp.float32(-jnp.inf)
    ml = [jnp.where(idx1 == e, neg_inf, l[e]) for e in range(NUM_EXPERTS)]
    s01, j01 = pairmax(ml[0], idx_const[0], ml[1], idx_const[1])
    s23, j23 = pairmax(ml[2], idx_const[2], ml[3], idx_const[3])
    m2, idx2 = pairmax(s01, j01, s23, j23)

    # softmax over the -inf-filled sparse logits == 2-way softmax of {m1, m2}.
    # Exact reciprocal: kernel is HBM-bound, the approx EUP recip is not needed.
    e2 = jnp.exp(m2 - m1)
    inv = 1.0 / (1.0 + e2)
    p1 = inv                       # exp(0) * inv
    p2 = e2 * inv

    # Dense (EF, R) probs, one fused nested-select per expert row group.
    for e in range(NUM_EXPERTS):
        probs_ref[e * FOLD:(e + 1) * FOLD, :] = jnp.where(
            idx1 == e, p1, jnp.where(idx2 == e, p2, 0.0))
    idx_ref[0:FOLD, :] = idx1
    idx_ref[FOLD:2 * FOLD, :] = idx2


def _choose_tile(total_tokens):
    """Tokens per grid step (multiple of TILE_MIN so R = tile/FOLD is a
    multiple of 128 lanes).  Biggest tile wins (HBM-bound, ~0.35us fixed cost
    per grid step), but keep >= 2 steps whenever possible so ("parallel",)
    shards across both v7x TensorCores.  TILE_MAX keeps the double-buffered
    working set ~5 MiB — comfortably inside v7x's 64 MiB and v5e's scoped
    VMEM (raised to 32 MiB below)."""
    n_steps = -(-total_tokens // TILE_MAX)
    if total_tokens > TILE_MIN:
        n_steps = max(n_steps, 2)
    per_step = -(-total_tokens // n_steps)
    return max(TILE_MIN, -(-per_step // TILE_MIN) * TILE_MIN)


def topk_router_folded(x2, weight, bias):
    """Kernel-native ("folded") layout.

    x2: (T, n_embed).  Returns
      probs_f: (EF, T_pad // FOLD) f32   element [8e+g, r] -> token 8r+g, expert e
      idx_f  : (KF, T_pad // FOLD) int32 element [8k+g, r] -> k-th id of token 8r+g
    Downstream MoE dispatch that can consume this layout avoids the
    layout-only un-permute HBM pass done in topk_router()."""
    T, D = x2.shape
    tile = _choose_tile(T)
    t_pad = -(-T // tile) * tile
    if t_pad != T:
        # Zero padding -> logits == bias for pad tokens; finite, discarded later.
        x2 = jnp.pad(x2, ((0, t_pad - T), (0, 0)))
    rows = t_pad // FOLD
    r_tile = tile // FOLD
    xf = x2.reshape(rows, DF)                      # free, contiguous reshape

    # Tiny constants (8 KiB / 128 B), folded once by XLA outside the hot loop:
    # wf[e*FOLD+g, 32*h+d] = weight[e, d] * (g == h); bf[e*FOLD+g] = bias[e].
    wf = jnp.einsum("gh,ed->eghd",
                    jnp.eye(FOLD, dtype=weight.dtype), weight).reshape(EF, DF)
    bf = jnp.repeat(bias, FOLD).reshape(EF, 1)

    probs_f, idx_f = pl.pallas_call(
        router_kernel,
        out_shape=(
            jax.ShapeDtypeStruct((EF, rows), jnp.float32),
            jax.ShapeDtypeStruct((KF, rows), jnp.int32),
        ),
        grid=(t_pad // tile,),
        in_specs=[
            pl.BlockSpec((r_tile, DF), lambda i: (i, 0)),
            pl.BlockSpec((EF, DF), lambda i: (0, 0)),
            pl.BlockSpec((EF, 1), lambda i: (0, 0)),
        ],
        out_specs=(
            pl.BlockSpec((EF, r_tile), lambda i: (0, i)),
            pl.BlockSpec((KF, r_tile), lambda i: (0, i)),
        ),
        compiler_params=pltpu.CompilerParams(
            dimension_semantics=("parallel",),
            vmem_limit_bytes=32 * 1024 * 1024),
    )(xf, wf, bf)
    return probs_f, idx_f


@jax.jit
def topk_router(x, weight, bias):
    """Module-compatible entry point.

    x: (B, S, n_embed) f32; weight: (num_experts, n_embed); bias: (num_experts,)
    Returns (router_probs (B, S, E) f32, expert_indices (B, S, top_k) int32)."""
    B, S, D = x.shape
    E, K = weight.shape[0], TOP_K
    assert D == N_EMBED and E == NUM_EXPERTS and bias.shape == (E,)
    T = B * S

    probs_f, idx_f = topk_router_folded(x.reshape(T, D), weight, bias)
    rows = probs_f.shape[1]
    t_pad = rows * FOLD

    # Un-permute the kernel-native layout back to token-major (B, S, .).
    # This is the single remaining layout-only pass over the (small) outputs;
    # callers able to consume the folded layout should skip it (see above).
    router = (probs_f.reshape(E, FOLD, rows).transpose(2, 1, 0)
              .reshape(t_pad, E)[:T].reshape(B, S, E))
    indices = (idx_f.reshape(K, FOLD, rows).transpose(2, 1, 0)
               .reshape(t_pad, K)[:T].reshape(B, S, K))
    return router, indices


def topk_router_ref(x, weight, bias):
    """Pure-JAX reference matching the PyTorch module semantics."""
    logits = jnp.einsum("bsd,ed->bse", x, weight,
                        precision=lax.Precision.HIGHEST) + bias
    top_vals, top_idx = lax.top_k(logits, TOP_K)
    oh = jax.nn.one_hot(top_idx, NUM_EXPERTS, dtype=logits.dtype)   # (B,S,K,E)
    scattered = jnp.einsum("bske,bsk->bse", oh, top_vals)
    sparse = jnp.where(oh.sum(axis=-2) > 0, scattered,
                       jnp.full_like(logits, -jnp.inf))
    return jax.nn.softmax(sparse, axis=-1), top_idx


if __name__ == "__main__":
    key = jax.random.PRNGKey(0)
    kx, kw, kb = jax.random.split(key, 3)

    # Deterministic nn.Linear-style init: U(-1/sqrt(fan_in), 1/sqrt(fan_in)).
    bound = 1.0 / (N_EMBED ** 0.5)
    weight = jax.random.uniform(kw, (NUM_EXPERTS, N_EMBED),
                                minval=-bound, maxval=bound, dtype=jnp.float32)
    bias = jax.random.uniform(kb, (NUM_EXPERTS,),
                              minval=-bound, maxval=bound, dtype=jnp.float32)

    def run_and_check(B, S, k):
        x = jax.random.normal(k, (B, S, N_EMBED), dtype=jnp.float32)
        out, idx = topk_router(x, weight, bias)
        jax.block_until_ready(out)
        jax.block_until_ready(idx)
        ref_out, ref_idx = topk_router_ref(x, weight, bias)
        assert out.shape == ref_out.shape and idx.shape == ref_idx.shape
        # Tolerance covers MXU f32 multi-pass rounding vs the HIGHEST-precision
        # XLA reference (the kernel reciprocal itself is exact now).
        assert jnp.allclose(out, ref_out, atol=2e-3), "router probs mismatch"
        assert jnp.array_equal(jnp.sort(idx, -1), jnp.sort(ref_idx, -1)), \
            "expert index mismatch"

    # Small demo shape (one padded tile): batch=2, seq=8, hidden=32.
    run_and_check(2, 8, kx)
    # T = 2048: two 1024-token tiles -> pipelined grid + v7x megacore path.
    run_and_check(8, 256, jax.random.fold_in(kx, 1))
    # Ragged T = 1500 -> exercises the pad-to-tile path (no single-block fallback).
    run_and_check(3, 500, jax.random.fold_in(kx, 2))

    print("KERNEL_OK")
</pallas_src>

<mosaic_0001>
module attributes {stable_mosaic.version = 11 : i64} {
  func.func @router_kernel(%arg0: i32, %arg1: memref<128x256xf32, #tpu.memory_space<vmem>>, %arg2: memref<32x256xf32, #tpu.memory_space<vmem>>, %arg3: memref<32x1xf32, #tpu.memory_space<vmem>>, %arg4: memref<32x128xf32, #tpu.memory_space<vmem>>, %arg5: memref<16x128xi32, #tpu.memory_space<vmem>>) attributes {dimension_semantics = [#tpu.dimension_semantics<parallel>], iteration_bounds = array<i64: 1>, scalar_prefetch = 0 : i64, scratch_operands = 0 : i64, tpu.core_type = #tpu.core_type<tc>, window_params = [{transform_indices = @transform_0, window_bounds = array<i64: 128, 256>}, {pipeline_mode = #tpu.pipeline_mode<synchronous>, transform_indices = @transform_1, window_bounds = array<i64: 32, 256>}, {pipeline_mode = #tpu.pipeline_mode<synchronous>, transform_indices = @transform_2, window_bounds = array<i64: 32, 1>}, {transform_indices = @transform_3, window_bounds = array<i64: 32, 128>}, {transform_indices = @transform_4, window_bounds = array<i64: 16, 128>}]} {
    %c0 = arith.constant 0 : index
    %c0_0 = arith.constant 0 : index
    %0 = vector.load %arg1[%c0, %c0_0] : memref<128x256xf32, #tpu.memory_space<vmem>>, vector<128x256xf32>
    %c0_1 = arith.constant 0 : index
    %c0_2 = arith.constant 0 : index
    %1 = vector.load %arg2[%c0_1, %c0_2] : memref<32x256xf32, #tpu.memory_space<vmem>>, vector<32x256xf32>
    %cst = arith.constant dense<0.000000e+00> : vector<32x128xf32>
    %2 = tpu.matmul %1, %0, %cst {dimension_numbers = #tpu.dot_dimension_numbers<[1], [1], [0], [0], [0, 0, 1, 0], [], []>} : vector<32x256xf32>, vector<128x256xf32>, vector<32x128xf32> -> vector<32x128xf32>
    %c0_3 = arith.constant 0 : index
    %c0_4 = arith.constant 0 : index
    %3 = vector.load %arg3[%c0_3, %c0_4] : memref<32x1xf32, #tpu.memory_space<vmem>>, vector<32x1xf32>
    %4 = vector.broadcast %3 : vector<32x1xf32> to vector<32x128xf32>
    %5 = arith.addf %2, %4 : vector<32x128xf32>
    %6 = vector.extract_strided_slice %5 {offsets = [0, 0], sizes = [8, 128], strides = [1, 1]} : vector<32x128xf32> to vector<8x128xf32>
    %7 = vector.extract_strided_slice %5 {offsets = [8, 0], sizes = [8, 128], strides = [1, 1]} : vector<32x128xf32> to vector<8x128xf32>
    %8 = vector.extract_strided_slice %5 {offsets = [16, 0], sizes = [8, 128], strides = [1, 1]} : vector<32x128xf32> to vector<8x128xf32>
    %9 = vector.extract_strided_slice %5 {offsets = [24, 0], sizes = [8, 128], strides = [1, 1]} : vector<32x128xf32> to vector<8x128xf32>
    %c0_i32 = arith.constant 0 : i32
    %10 = vector.broadcast %c0_i32 : i32 to vector<8x128xi32>
    %c1_i32 = arith.constant 1 : i32
    %11 = vector.broadcast %c1_i32 : i32 to vector<8x128xi32>
    %c2_i32 = arith.constant 2 : i32
    %12 = vector.broadcast %c2_i32 : i32 to vector<8x128xi32>
    %c3_i32 = arith.constant 3 : i32
    %13 = vector.broadcast %c3_i32 : i32 to vector<8x128xi32>
    %14 = arith.cmpf ogt, %7, %6 : vector<8x128xf32>
    %15 = arith.select %14, %7, %6 : vector<8x128xi1>, vector<8x128xf32>
    %16 = arith.select %14, %11, %10 : vector<8x128xi1>, vector<8x128xi32>
    %17 = arith.cmpf ogt, %9, %8 : vector<8x128xf32>
    %18 = arith.select %17, %9, %8 : vector<8x128xi1>, vector<8x128xf32>
    %19 = arith.select %17, %13, %12 : vector<8x128xi1>, vector<8x128xi32>
    %20 = arith.cmpf ogt, %18, %15 : vector<8x128xf32>
    %21 = arith.select %20, %18, %15 : vector<8x128xi1>, vector<8x128xf32>
    %22 = arith.select %20, %19, %16 : vector<8x128xi1>, vector<8x128xi32>
    %c0_i32_5 = arith.constant 0 : i32
    %23 = vector.broadcast %c0_i32_5 : i32 to vector<8x128xi32>
    %24 = arith.cmpi eq, %22, %23 : vector<8x128xi32>
    %cst_6 = arith.constant 0xFF800000 : f32
    %25 = vector.broadcast %cst_6 : f32 to vector<8x128xf32>
    %26 = arith.select %24, %25, %6 : vector<8x128xi1>, vector<8x128xf32>
    %c1_i32_7 = arith.constant 1 : i32
    %27 = vector.broadcast %c1_i32_7 : i32 to vector<8x128xi32>
    %28 = arith.cmpi eq, %22, %27 : vector<8x128xi32>
    %cst_8 = arith.constant 0xFF800000 : f32
    %29 = vector.broadcast %cst_8 : f32 to vector<8x128xf32>
    %30 = arith.select %28, %29, %7 : vector<8x128xi1>, vector<8x128xf32>
    %c2_i32_9 = arith.constant 2 : i32
    %31 = vector.broadcast %c2_i32_9 : i32 to vector<8x128xi32>
    %32 = arith.cmpi eq, %22, %31 : vector<8x128xi32>
    %cst_10 = arith.constant 0xFF800000 : f32
    %33 = vector.broadcast %cst_10 : f32 to vector<8x128xf32>
    %34 = arith.select %32, %33, %8 : vector<8x128xi1>, vector<8x128xf32>
    %c3_i32_11 = arith.constant 3 : i32
    %35 = vector.broadcast %c3_i32_11 : i32 to vector<8x128xi32>
    %36 = arith.cmpi eq, %22, %35 : vector<8x128xi32>
    %cst_12 = arith.constant 0xFF800000 : f32
    %37 = vector.broadcast %cst_12 : f32 to vector<8x128xf32>
    %38 = arith.select %36, %37, %9 : vector<8x128xi1>, vector<8x128xf32>
    %39 = arith.cmpf ogt, %30, %26 : vector<8x128xf32>
    %40 = arith.select %39, %30, %26 : vector<8x128xi1>, vector<8x128xf32>
    %41 = arith.select %39, %11, %10 : vector<8x128xi1>, vector<8x128xi32>
    %42 = arith.cmpf ogt, %38, %34 : vector<8x128xf32>
    %43 = arith.select %42, %38, %34 : vector<8x128xi1>, vector<8x128xf32>
    %44 = arith.select %42, %13, %12 : vector<8x128xi1>, vector<8x128xi32>
    %45 = arith.cmpf ogt, %43, %40 : vector<8x128xf32>
    %46 = arith.select %45, %43, %40 : vector<8x128xi1>, vector<8x128xf32>
    %47 = arith.select %45, %44, %41 : vector<8x128xi1>, vector<8x128xi32>
    %48 = arith.subf %46, %21 : vector<8x128xf32>
    %49 = math.exp %48 : vector<8x128xf32>
    %cst_13 = arith.constant 1.000000e+00 : f32
    %50 = vector.broadcast %cst_13 : f32 to vector<8x128xf32>
    %51 = arith.addf %50, %49 : vector<8x128xf32>
    %cst_14 = arith.constant 1.000000e+00 : f32
    %52 = vector.broadcast %cst_14 : f32 to vector<8x128xf32>
    %53 = arith.divf %52, %51 : vector<8x128xf32>
    %54 = arith.mulf %49, %53 : vector<8x128xf32>
    %c0_i32_15 = arith.constant 0 : i32
    %55 = vector.broadcast %c0_i32_15 : i32 to vector<8x128xi32>
    %56 = arith.cmpi eq, %22, %55 : vector<8x128xi32>
    %c0_i32_16 = arith.constant 0 : i32
    %57 = vector.broadcast %c0_i32_16 : i32 to vector<8x128xi32>
    %58 = arith.cmpi eq, %47, %57 : vector<8x128xi32>
    %cst_17 = arith.constant 0.000000e+00 : f32
    %59 = vector.broadcast %cst_17 : f32 to vector<8x128xf32>
    %60 = arith.select %58, %54, %59 : vector<8x128xi1>, vector<8x128xf32>
    %61 = arith.select %56, %53, %60 : vector<8x128xi1>, vector<8x128xf32>
    %c0_18 = arith.constant 0 : index
    %c0_19 = arith.constant 0 : index
    %62 = vector.load %arg4[%c0_18, %c0_19] : memref<32x128xf32, #tpu.memory_space<vmem>>, vector<8x128xf32>
    tpu.vector_store %arg4[%c0_18, %c0_19], %61 {strides = array<i32>} : memref<32x128xf32, #tpu.memory_space<vmem>>, vector<8x128xf32>,
    %c1_i32_20 = arith.constant 1 : i32
    %63 = vector.broadcast %c1_i32_20 : i32 to vector<8x128xi32>
    %64 = arith.cmpi eq, %22, %63 : vector<8x128xi32>
    %c1_i32_21 = arith.constant 1 : i32
    %65 = vector.broadcast %c1_i32_21 : i32 to vector<8x128xi32>
    %66 = arith.cmpi eq, %47, %65 : vector<8x128xi32>
    %cst_22 = arith.constant 0.000000e+00 : f32
    %67 = vector.broadcast %cst_22 : f32 to vector<8x128xf32>
    %68 = arith.select %66, %54, %67 : vector<8x128xi1>, vector<8x128xf32>
    %69 = arith.select %64, %53, %68 : vector<8x128xi1>, vector<8x128xf32>
    %c8 = arith.constant 8 : index
    %c0_23 = arith.constant 0 : index
    %70 = vector.load %arg4[%c8, %c0_23] : memref<32x128xf32, #tpu.memory_space<vmem>>, vector<8x128xf32>
    tpu.vector_store %arg4[%c8, %c0_23], %69 {strides = array<i32>} : memref<32x128xf32, #tpu.memory_space<vmem>>, vector<8x128xf32>,
    %c2_i32_24 = arith.constant 2 : i32
    %71 = vector.broadcast %c2_i32_24 : i32 to vector<8x128xi32>
    %72 = arith.cmpi eq, %22, %71 : vector<8x128xi32>
    %c2_i32_25 = arith.constant 2 : i32
    %73 = vector.broadcast %c2_i32_25 : i32 to vector<8x128xi32>
    %74 = arith.cmpi eq, %47, %73 : vector<8x128xi32>
    %cst_26 = arith.constant 0.000000e+00 : f32
    %75 = vector.broadcast %cst_26 : f32 to vector<8x128xf32>
    %76 = arith.select %74, %54, %75 : vector<8x128xi1>, vector<8x128xf32>
    %77 = arith.select %72, %53, %76 : vector<8x128xi1>, vector<8x128xf32>
    %c16 = arith.constant 16 : index
    %c0_27 = arith.constant 0 : index
    %78 = vector.load %arg4[%c16, %c0_27] : memref<32x128xf32, #tpu.memory_space<vmem>>, vector<8x128xf32>
    tpu.vector_store %arg4[%c16, %c0_27], %77 {strides = array<i32>} : memref<32x128xf32, #tpu.memory_space<vmem>>, vector<8x128xf32>,
    %c3_i32_28 = arith.constant 3 : i32
    %79 = vector.broadcast %c3_i32_28 : i32 to vector<8x128xi32>
    %80 = arith.cmpi eq, %22, %79 : vector<8x128xi32>
    %c3_i32_29 = arith.constant 3 : i32
    %81 = vector.broadcast %c3_i32_29 : i32 to vector<8x128xi32>
    %82 = arith.cmpi eq, %47, %81 : vector<8x128xi32>
    %cst_30 = arith.constant 0.000000e+00 : f32
    %83 = vector.broadcast %cst_30 : f32 to vector<8x128xf32>
    %84 = arith.select %82, %54, %83 : vector<8x128xi1>, vector<8x128xf32>
    %85 = arith.select %80, %53, %84 : vector<8x128xi1>, vector<8x128xf32>
    %c24 = arith.constant 24 : index
    %c0_31 = arith.constant 0 : index
    %86 = vector.load %arg4[%c24, %c0_31] : memref<32x128xf32, #tpu.memory_space<vmem>>, vector<8x128xf32>
    tpu.vector_store %arg4[%c24, %c0_31], %85 {strides = array<i32>} : memref<32x128xf32, #tpu.memory_space<vmem>>, vector<8x128xf32>,
    %c0_32 = arith.constant 0 : index
    %c0_33 = arith.constant 0 : index
    %87 = vector.load %arg5[%c0_32, %c0_33] : memref<16x128xi32, #tpu.memory_space<vmem>>, vector<8x128xi32>
    tpu.vector_store %arg5[%c0_32, %c0_33], %22 {strides = array<i32>} : memref<16x128xi32, #tpu.memory_space<vmem>>, vector<8x128xi32>,
    %c8_34 = arith.constant 8 : index
    %c0_35 = arith.constant 0 : index
    %88 = vector.load %arg5[%c8_34, %c0_35] : memref<16x128xi32, #tpu.memory_space<vmem>>, vector<8x128xi32>
    tpu.vector_store %arg5[%c8_34, %c0_35], %47 {strides = array<i32>} : memref<16x128xi32, #tpu.memory_space<vmem>>, vector<8x128xi32>,
    return
  }
  func.func @transform_0(%arg0: i32) -> (i32, i32) {
    %c0_i32 = arith.constant 0 : i32
    %c0_i32_0 = arith.constant 0 : i32
    return %arg0, %c0_i32 : i32, i32
  }
  func.func @transform_1(%arg0: i32) -> (i32, i32) {
    %c0_i32 = arith.constant 0 : i32
    %c0_i32_0 = arith.constant 0 : i32
    %c0_i32_1 = arith.constant 0 : i32
    return %c0_i32, %c0_i32_0 : i32, i32
  }
  func.func @transform_2(%arg0: i32) -> (i32, i32) {
    %c0_i32 = arith.constant 0 : i32
    %c0_i32_0 = arith.constant 0 : i32
    %c0_i32_1 = arith.constant 0 : i32
    return %c0_i32, %c0_i32_0 : i32, i32
  }
  func.func @transform_3(%arg0: i32) -> (i32, i32) {
    %c0_i32 = arith.constant 0 : i32
    %c0_i32_0 = arith.constant 0 : i32
    return %c0_i32, %arg0 : i32, i32
  }
  func.func @transform_4(%arg0: i32) -> (i32, i32) {
    %c0_i32 = arith.constant 0 : i32
    %c0_i32_0 = arith.constant 0 : i32
    return %c0_i32, %arg0 : i32, i32
  }
}

</mosaic_0001>

<llo_original>
// kernel: topk_router.1
$region0: #{topk_router.1}
  #allocation0 [shape = 'u32[]', space=smem, size = 0x4, offset = 0x4, fixed_abs, tag = 'smem constant byte address 0x4 - core index']
  #allocation1 [shape = 'u32[144,128]{1,0:T(1,128)}', space=vmem, size = 0x12000, scoped, tag = 'internal scratch']
  %s0 = inlined_call_operand.vmem [shape: f32[128,256], index: 0, kind: input, shape index: {}]
  %s1 = inlined_call_operand.vmem [shape: f32[32,256], index: 1, kind: input, shape index: {}]
  %s2 = inlined_call_operand.vmem [shape: f32[32,1], index: 2, kind: input, shape index: {}]
  %s3 = inlined_call_operand.vmem [shape: f32[32,128], index: 3, kind: output, shape index: {0}]
  %s4 = inlined_call_operand.vmem [shape: s32[16,128], index: 4, kind: output, shape index: {1}]
  %5 = xla_tuple %s3, %s4
  %s6 = sld [smem:[#allocation0]]
  $region30: #{topk_router.1} parent=0
    _
  %s8 = ssub.s32 1, %s6
  %s9 = scalar_select 0, %s8, %s6
  // Predicated region
  $region2: #{topk_router.1} parent=0 // pred_check
    _
  $region3: #{topk_router.1} parent=0 // pred_check_branch
    %11 = sbr.rel (0) target = $region5
  $region4: #{topk_router.1} parent=0 // pred_region
    _
  $region5: #{topk_router.1} parent=0 // pred_fallthru
    _
  // Predicated region
  $region6: #{topk_router.1} parent=0 // pred_check
    _
  $region7: #{topk_router.1} parent=0 // pred_check_branch
    %13 = sbr.rel (0) target = $region9
  $region8: #{topk_router.1} parent=0 // pred_region
    _
  $region9: #{topk_router.1} parent=0 // pred_fallthru
    _
  // Predicated region
  $region10: #{topk_router.1} parent=0 // pred_check
    _
  $region11: #{topk_router.1} parent=0 // pred_check_branch
    %15 = sbr.rel (0) target = $region13
  $region12: #{topk_router.1} parent=0 // pred_region
    _
  $region13: #{topk_router.1} parent=0 // pred_fallthru
    _
  %v16 = vld [vmem:[%s0] sm:$0xff]
  %v17 = vld [vmem:[%s0 + $0x8] sm:$0xff]
  %v18 = vld [vmem:[%s0 + $0x10] sm:$0xff]
  %v19 = vld [vmem:[%s0 + $0x18] sm:$0xff]
  %v20 = vld [vmem:[%s0 + $0x20] sm:$0xff]
  %v21 = vld [vmem:[%s0 + $0x28] sm:$0xff]
  %v22 = vld [vmem:[%s0 + $0x30] sm:$0xff]
  %v23 = vld [vmem:[%s0 + $0x38] sm:$0xff]
  %v24 = vld [vmem:[%s0 + $0x40] sm:$0xff]
  %v25 = vld [vmem:[%s0 + $0x48] sm:$0xff]
  %v26 = vld [vmem:[%s0 + $0x50] sm:$0xff]
  %v27 = vld [vmem:[%s0 + $0x58] sm:$0xff]
  %v28 = vld [vmem:[%s0 + $0x60] sm:$0xff]
  %v29 = vld [vmem:[%s0 + $0x68] sm:$0xff]
  %v30 = vld [vmem:[%s0 + $0x70] sm:$0xff]
  %v31 = vld [vmem:[%s0 + $0x78] sm:$0xff]
  %v32 = vld [vmem:[%s0 + $0x80] sm:$0xff]
  %v33 = vld [vmem:[%s0 + $0x88] sm:$0xff]
  %v34 = vld [vmem:[%s0 + $0x90] sm:$0xff]
  %v35 = vld [vmem:[%s0 + $0x98] sm:$0xff]
  %v36 = vld [vmem:[%s0 + $0xa0] sm:$0xff]
  %v37 = vld [vmem:[%s0 + $0xa8] sm:$0xff]
  %v38 = vld [vmem:[%s0 + $0xb0] sm:$0xff]
  %v39 = vld [vmem:[%s0 + $0xb8] sm:$0xff]
  %v40 = vld [vmem:[%s0 + $0xc0] sm:$0xff]
  %v41 = vld [vmem:[%s0 + $0xc8] sm:$0xff]
  %v42 = vld [vmem:[%s0 + $0xd0] sm:$0xff]
  %v43 = vld [vmem:[%s0 + $0xd8] sm:$0xff]
  %v44 = vld [vmem:[%s0 + $0xe0] sm:$0xff]
  %v45 = vld [vmem:[%s0 + $0xe8] sm:$0xff]
  %v46 = vld [vmem:[%s0 + $0xf0] sm:$0xff]
  %v47 = vld [vmem:[%s0 + $0xf8] sm:$0xff]
  %v48 = vld [vmem:[%s1] sm:$0xff]
  %v49 = vld [vmem:[%s1 + $0x8] sm:$0xff]
  %v50 = vld [vmem:[%s1 + $0x10] sm:$0xff]
  %v51 = vld [vmem:[%s1 + $0x18] sm:$0xff]
  %v52 = vld [vmem:[%s1 + $0x20] sm:$0xff]
  %v53 = vld [vmem:[%s1 + $0x28] sm:$0xff]
  %v54 = vld [vmem:[%s1 + $0x30] sm:$0xff]
  %v55 = vld [vmem:[%s1 + $0x38] sm:$0xff]
  %v56 = vld [vmem:[%s2] sm:$0xff]
  %v57 = vld [vmem:[%s2 + $0x8] sm:$0xff]
  %v58 = vld [vmem:[%s2 + $0x10] sm:$0xff]
  %v59 = vld [vmem:[%s2 + $0x18] sm:$0xff]
  %61 = vset.pattern.permute.xlu0 0
  %62 = vperm.xlu0 %61, %v56
  %v63 = vpop.permute.xlu0 %62
  %66 = vset.pattern.permute.xlu0 0
  %67 = vperm.xlu0 %66, %v57
  %v68 = vpop.permute.xlu0 %67
  %71 = vset.pattern.permute.xlu0 0
  %72 = vperm.xlu0 %71, %v58
  %v73 = vpop.permute.xlu0 %72
  %76 = vset.pattern.permute.xlu0 0
  %77 = vperm.xlu0 %76, %v59
  %v78 = vpop.permute.xlu0 %77
  %80 = vmatprep.subr.mxu0 %v17
  %81 = vmatpush1.xpose.msra.mxu0 %v16
  %82 = vmatprep.subr.mxu0 %v19
  %83 = vmatpush1.xpose.msra.mxu0 %v18
  %84 = vmatprep.subr.mxu0 %v21
  %85 = vmatpush1.xpose.msra.mxu0 %v20
  %86 = vmatprep.subr.mxu0 %v23
  %87 = vmatpush1.xpose.msra.mxu0 %v22
  %88 = vmatprep.subr.mxu0 %v25
  %89 = vmatpush1.xpose.msra.mxu0 %v24
  %90 = vmatprep.subr.mxu0 %v27
  %91 = vmatpush1.xpose.msra.mxu0 %v26
  %92 = vmatprep.subr.mxu0 %v29
  %93 = vmatpush1.xpose.msra.mxu0 %v28
  %94 = vmatprep.subr.mxu0 %v31
  %95 = vmatpush1.xpose.msra.mxu0 %v30
  %96 = vmatprep.subr.mxu0 %v33
  %97 = vmatpush1.xpose.msra.mxu0 %v32
  %98 = vmatprep.subr.mxu0 %v35
  %99 = vmatpush1.xpose.msra.mxu0 %v34
  %100 = vmatprep.subr.mxu0 %v37
  %101 = vmatpush1.xpose.msra.mxu0 %v36
  %102 = vmatprep.subr.mxu0 %v39
  %103 = vmatpush1.xpose.msra.mxu0 %v38
  %104 = vmatprep.subr.mxu0 %v41
  %105 = vmatpush1.xpose.msra.mxu0 %v40
  %106 = vmatprep.subr.mxu0 %v43
  %107 = vmatpush1.xpose.msra.mxu0 %v42
  %108 = vmatprep.subr.mxu0 %v45
  %109 = vmatpush1.xpose.msra.mxu0 %v44
  %110 = vmatprep.subr.mxu0 %v47
  %111 = vmatpush1.xpose.msra.mxu0 %v46
  %112 = vmatprep.subr.mxu0 0.0
  %113 = vmatpush1.xpose.msra.mxu0 0.0
  %114 = vmatprep.subr.mxu0 0.0
  %115 = vmatpush1.xpose.msra.mxu0 0.0
  %116 = vmatprep.subr.mxu0 0.0
  %117 = vmatpush1.xpose.msra.mxu0 0.0
  %118 = vmatprep.subr.mxu0 0.0
  %119 = vmatpush1.xpose.msra.mxu0 0.0
  %120 = vmatprep.subr.mxu0 0.0
  %121 = vmatpush1.xpose.msra.mxu0 0.0
  %122 = vmatprep.subr.mxu0 0.0
  %123 = vmatpush1.xpose.msra.mxu0 0.0
  %124 = vmatprep.subr.mxu0 0.0
  %125 = vmatpush1.xpose.msra.mxu0 0.0
  %126 = vmatprep.subr.mxu0 0.0
  %127 = vmatpush1.xpose.msra.mxu0 0.0
  %128 = vmatprep.subr.mxu0 0.0
  %129 = vmatpush1.xpose.msra.mxu0 0.0
  %130 = vmatprep.subr.mxu0 0.0
  %131 = vmatpush1.xpose.msra.mxu0 0.0
  %132 = vmatprep.subr.mxu0 0.0
  %133 = vmatpush1.xpose.msra.mxu0 0.0
  %134 = vmatprep.subr.mxu0 0.0
  %135 = vmatpush1.xpose.msra.mxu0 0.0
  %136 = vmatprep.subr.mxu0 0.0
  %137 = vmatpush1.xpose.msra.mxu0 0.0
  %138 = vmatprep.subr.mxu0 0.0
  %139 = vmatpush1.xpose.msra.mxu0 0.0
  %140 = vmatprep.subr.mxu0 0.0
  %141 = vmatpush1.xpose.msra.mxu0 0.0
  %142 = vmatprep.subr.mxu0 0.0
  %143 = vmatpush1.xpose.msra.mxu0 0.0
  %144 = vmatprep.mubr.f32.mxu0 %v49
  %145 = vmatmul.mubr.f32.gmra.mrb[0].mxu0 %v48
  %v146 = vpop.f32.mrb[0].mxu0
  %v147 = vadd.f32 %v63, %v146
  %v148 = vpop.f32.mrb[0].mxu0
  %149 = vmatprep.mubr.f32.mxu0 %v51
  %150 = vmatmul.mubr.f32.gmra.mrb[0].mxu0 %v50
  %v151 = vpop.f32.mrb[0].mxu0
  %v152 = vadd.f32 %v68, %v151
  %v153 = vpop.f32.mrb[0].mxu0
  %154 = vmatprep.mubr.f32.mxu0 %v53
  %155 = vmatmul.mubr.f32.gmra.mrb[0].mxu0 %v52
  %v156 = vpop.f32.mrb[0].mxu0
  %v157 = vadd.f32 %v73, %v156
  %v158 = vpop.f32.mrb[0].mxu0
  %159 = vmatprep.mubr.f32.mxu0 %v55
  %160 = vmatmul.mubr.f32.gmra.mrb[0].mxu0 %v54
  %v161 = vpop.f32.mrb[0].mxu0
  %v162 = vadd.f32 %v78, %v161
  %v163 = vpop.f32.mrb[0].mxu0
  %164 = vdwg.mxu0
  %vm165 = vcmp.gt.f32.partialorder %v152, %v147
  %v166 = vsel %vm165, %v152, %v147
  %v167 = vsel %vm165, 1, 0
  %vm168 = vcmp.gt.f32.partialorder %v162, %v157
  %v169 = vsel %vm168, %v162, %v157
  %v170 = vsel %vm168, 3, 2
  %vm171 = vcmp.gt.f32.partialorder %v169, %v166
  %v172 = vsel %vm171, %v169, %v166
  %v173 = vsel %vm171, %v170, %v167
  %vm174 = vcmp.eq.s32.totalorder %v173, 0
  %v175 = vsel %vm174, -inf, %v147
  %vm176 = vcmp.eq.s32.totalorder %v173, 1
  %v177 = vsel %vm176, -inf, %v152
  %vm178 = vcmp.eq.s32.totalorder %v173, 2
  %v179 = vsel %vm178, -inf, %v157
  %vm180 = vcmp.eq.s32.totalorder %v173, 3
  %v181 = vsel %vm180, -inf, %v162
  %vm182 = vcmp.gt.f32.partialorder %v177, %v175
  %v183 = vsel %vm182, %v177, %v175
  %v184 = vsel %vm182, 1, 0
  %vm185 = vcmp.gt.f32.partialorder %v181, %v179
  %v186 = vsel %vm185, %v181, %v179
  %v187 = vsel %vm185, 3, 2
  %vm188 = vcmp.gt.f32.partialorder %v186, %v183
  %v189 = vsel %vm188, %v186, %v183
  %v190 = vsel %vm188, %v187, %v184
  %v191 = vsub.f32 %v189, %v172
  %v192 = vmul.f32 %v191, 1.442695
  %v193 = vpow.pop %v192
  %v194 = vadd.f32 %v193, 1.0
  %v195 = vrcp.pop %v194
  %v196 = vmul.f32 1.0, %v195
  %v197 = vmul.f32 %v193, %v196
  %vm198 = vcmp.eq.s32.totalorder %v190, 0
  %v199 = vsel %vm198, %v197, 0.0
  %v200 = vsel %vm174, %v196, %v199
  %201 = vst [vmem:[%s3] sm:$0xff] %v200
  %vm202 = vcmp.eq.s32.totalorder %v190, 1
  %v203 = vsel %vm202, %v197, 0.0
  %v204 = vsel %vm176, %v196, %v203
  %205 = vst [vmem:[%s3 + $0x8] sm:$0xff] %v204
  %vm206 = vcmp.eq.s32.totalorder %v190, 2
  %v207 = vsel %vm206, %v197, 0.0
  %v208 = vsel %vm178, %v196, %v207
  %209 = vst [vmem:[%s3 + $0x10] sm:$0xff] %v208
  %vm210 = vcmp.eq.s32.totalorder %v190, 3
  %v211 = vsel %vm210, %v197, 0.0
  %v212 = vsel %vm180, %v196, %v211
  %213 = vst [vmem:[%s3 + $0x18] sm:$0xff] %v212
  %214 = vst [vmem:[%s4] sm:$0xff] %v173
  %215 = vst [vmem:[%s4 + $0x8] sm:$0xff] %v190
  // Predicated region
  $region14: #{topk_router.1} parent=0 // pred_check
    _
  $region15: #{topk_router.1} parent=0 // pred_check_branch
    %217 = sbr.rel (0) target = $region17
  $region16: #{topk_router.1} parent=0 // pred_region
    _
  $region17: #{topk_router.1} parent=0 // pred_fallthru
    _
  // Predicated region
  $region18: #{topk_router.1} parent=0 // pred_check
    _
  $region19: #{topk_router.1} parent=0 // pred_check_branch
    %219 = sbr.rel (0) target = $region21
  $region20: #{topk_router.1} parent=0 // pred_region
    _
  $region21: #{topk_router.1} parent=0 // pred_fallthru
    _
  // Predicated region
  $region22: #{topk_router.1} parent=0 // pred_check
    _
  $region23: #{topk_router.1} parent=0 // pred_check_branch
    %221 = sbr.rel (0) target = $region25
  $region24: #{topk_router.1} parent=0 // pred_region
    _
  $region25: #{topk_router.1} parent=0 // pred_fallthru
    _
  // Predicated region
  $region26: #{topk_router.1} parent=0 // pred_check
    _
  $region27: #{topk_router.1} parent=0 // pred_check_branch
    %223 = sbr.rel (0) target = $region29
  $region28: #{topk_router.1} parent=0 // pred_region
    _
  $region29: #{topk_router.1} parent=0 // pred_fallthru
    _

</llo_original>
